<compile_context>
chip_gen: v7x
topology: tpu7x:2x2x1
jax: 0.10.0
libtpu: 0.0.40
codegen_flags: <defaults>
</compile_context>

<pallas_src>
import functools

import jax
import jax.numpy as jnp
from jax.experimental import pallas as pl
from jax.experimental.pallas import tpu as pltpu


def _round_up(x, m):
    return ((x + m - 1) // m) * m


def _fixmatch_kernel(xuw_ref, xus_ref, w_ref, b_ref, out_ref, *,
                     threshold, batch_size, tile_b):
    i = pl.program_id(0)

    w = w_ref[...]                                   # [D, C] f32, VMEM-resident
    bias = b_ref[...]                                # [1, C] f32

    # Two independent MXU passes against the shared resident W (no concat copy).
    logits_uw = jnp.dot(xuw_ref[...], w, preferred_element_type=jnp.float32) + bias
    logits_us = jnp.dot(xus_ref[...], w, preferred_element_type=jnp.float32) + bias
    num_classes = logits_uw.shape[1]

    # Row validity: the wrapper does NOT pad the batch, so the tail tile's
    # trailing rows hold undefined data.  Clamp their logits to 0 before any
    # exp/log so no inf/NaN can poison the tile's partial sum.
    row = i * tile_b + jax.lax.broadcasted_iota(jnp.int32, (tile_b, 1), 0)
    valid = row < batch_size                                             # [tb, 1]
    logits_uw = jnp.where(valid, logits_uw, jnp.float32(0.0))
    logits_us = jnp.where(valid, logits_us, jnp.float32(0.0))

    # --- pseudo-labels from the weak-aug logits ----------------------------
    m_uw = jnp.max(logits_uw, axis=1, keepdims=True)                     # [tb, 1]
    sum_e = jnp.sum(jnp.exp(logits_uw - m_uw), axis=1, keepdims=True)    # [tb, 1]
    # softmax max prob = exp(m - m) / sum = 1 / sum   (exact reciprocal:
    # this value is compared against the threshold)
    max_p = pl.reciprocal(sum_e)

    # argmax over classes (first occurrence, matches torch.max / jnp.argmax)
    class_iota = jax.lax.broadcasted_iota(jnp.int32, logits_uw.shape, 1)
    cand = jnp.where(logits_uw == m_uw, class_iota, num_classes)
    p_hat = jnp.min(cand, axis=1, keepdims=True)                         # [tb, 1]

    # mask = max_p.ge(threshold).float(), zeroed on invalid (tail) rows
    mask = jnp.logical_and(max_p >= jnp.float32(threshold), valid)
    mask = mask.astype(jnp.float32)                                      # [tb, 1]

    # --- per-sample cross entropy on the strong-aug logits ------------------
    m_us = jnp.max(logits_us, axis=1, keepdims=True)
    lse = m_us + jnp.log(jnp.sum(jnp.exp(logits_us - m_us), axis=1, keepdims=True))
    onehot = (class_iota == p_hat).astype(jnp.float32)
    picked = jnp.sum(logits_us * onehot, axis=1, keepdims=True)
    ce = lse - picked                                                    # [tb, 1]

    # Partial sum of (ce * mask) for this tile, written lane-dense (8x128).
    partial = jnp.sum(ce * mask)
    out_ref[...] = jnp.full((8, 128), partial, dtype=jnp.float32)


def fixmatch_ssl_loss(inputs_uw, inputs_us, w, b, *, threshold, tile_b=128):
    """inputs_*: [B, C, H, W] float32 (NCHW); w: [D, C_cls] f32; b: [C_cls] f32."""
    batch = inputs_uw.shape[0]

    # Flatten only — no dtype cast, no pad: the kernel streams f32 directly.
    feat_uw = inputs_uw.reshape(batch, -1)                               # [B, D] f32
    feat_us = inputs_us.reshape(batch, -1)                               # [B, D] f32
    d = feat_uw.shape[1]
    num_classes = w.shape[1]
    b2d = b.reshape(1, -1).astype(jnp.float32)

    # Keep tile rows a multiple of 16 and guarantee >= 2 tiles whenever the
    # batch allows it (v7x has 2 TensorCores; "parallel" needs >= 1 tile each).
    tile_b = max(16, min(int(tile_b), _round_up(pl.cdiv(batch, 2), 16)))
    num_tiles = pl.cdiv(batch, tile_b)

    kernel = functools.partial(_fixmatch_kernel, threshold=float(threshold),
                               batch_size=batch, tile_b=tile_b)

    cost = pl.CostEstimate(
        flops=2 * 2 * batch * d * num_classes,
        transcendentals=2 * batch * num_classes,
        bytes_accessed=(2 * batch * d * 4 + d * num_classes * 4
                        + num_classes * 4 + num_tiles * 8 * 128 * 4),
    )

    # Working set: 2 feature inputs x 2 pipeline buffers (f32) + W/b (double
    # buffered by default) + per-tile output blocks.  Capped at 48 MiB so the
    # same sizing fits v7x's 64 MiB VMEM with headroom.
    vmem_need = (2 * 2 * tile_b * d + 2 * d * num_classes
                 + 2 * num_classes + 2 * 8 * 128) * 4
    vmem_limit = int(min(max(2 * vmem_need, 32 * 1024 * 1024), 48 * 1024 * 1024))

    out = pl.pallas_call(
        kernel,
        out_shape=jax.ShapeDtypeStruct((num_tiles * 8, 128), jnp.float32),
        grid=(num_tiles,),
        in_specs=[
            pl.BlockSpec((tile_b, d), lambda i: (i, 0)),                 # weak features
            pl.BlockSpec((tile_b, d), lambda i: (i, 0)),                 # strong features
            pl.BlockSpec((d, num_classes), lambda i: (0, 0)),            # W (resident)
            pl.BlockSpec((1, num_classes), lambda i: (0, 0)),            # b (resident)
        ],
        out_specs=pl.BlockSpec((8, 128), lambda i: (i, 0)),
        compiler_params=pltpu.CompilerParams(
            dimension_semantics=("parallel",),   # batch tiles shard across TCs (v7x)
            vmem_limit_bytes=vmem_limit,
        ),
        cost_estimate=cost,
    )(feat_uw, feat_us, w, b2d)

    # One partial per tile (each tile filled its 8x128 block with the same value).
    partials = out.reshape(num_tiles, 8, 128)[:, 0, 0]
    # ssl_loss = (ce * mask).mean() over the GLOBAL batch.
    return jnp.sum(partials) / jnp.float32(batch)


def _reference(inputs_uw, inputs_us, w, b, threshold):
    """Pure-JAX f32 reference mirroring the PyTorch forward."""
    batch = inputs_uw.shape[0]
    fw = inputs_uw.reshape(batch, -1)
    fs = inputs_us.reshape(batch, -1)
    logits_uw = jnp.dot(fw, w, preferred_element_type=jnp.float32) + b
    logits_us = jnp.dot(fs, w, preferred_element_type=jnp.float32) + b
    targets_u = jax.nn.softmax(logits_uw, axis=1)
    max_p = jnp.max(targets_u, axis=1)
    p_hat = jnp.argmax(targets_u, axis=1)
    mask = (max_p >= threshold).astype(jnp.float32)
    log_probs = jax.nn.log_softmax(logits_us, axis=1)
    ce = -jnp.take_along_axis(log_probs, p_hat[:, None], axis=1)[:, 0]
    return jnp.mean(ce * mask)


if __name__ == "__main__":
    key = jax.random.PRNGKey(0)
    k1, k2, k3, k4 = jax.random.split(key, 4)

    B, C, H, W = 24, 4, 16, 16         # NCHW images (weak & strong aug); B=24 gives
    NUM_CLASSES = 10                   # 2 tiles (16 + tail of 8) -> exercises the
    D = C * H * W                      # unpadded remainder-tile path.  D = 1024.
    THRESHOLD = 0.2
    TEMPERATURE = 1.0                  # FixMatch T (unused in this forward path)

    inputs_uw = jax.random.normal(k1, (B, C, H, W), dtype=jnp.float32)
    inputs_us = jax.random.normal(k2, (B, C, H, W), dtype=jnp.float32)
    # Deterministic synthetic "model" parameters (linear classifier).
    w_cls = jax.random.normal(k3, (D, NUM_CLASSES), dtype=jnp.float32) * 0.05
    b_cls = jax.random.normal(k4, (NUM_CLASSES,), dtype=jnp.float32) * 0.01

    loss = fixmatch_ssl_loss(inputs_uw, inputs_us, w_cls, b_cls,
                             threshold=THRESHOLD)
    jax.block_until_ready(loss)

    ref = _reference(inputs_uw, inputs_us, w_cls, b_cls, THRESHOLD)
    assert jnp.allclose(loss, ref, rtol=1e-3, atol=1e-3), (loss, ref)

    print("KERNEL_OK")
</pallas_src>

<mosaic_0001>
module attributes {stable_mosaic.version = 11 : i64} {
  func.func @_fixmatch_kernel(%arg0: i32, %arg1: memref<16x1024xf32, #tpu.memory_space<vmem>>, %arg2: memref<16x1024xf32, #tpu.memory_space<vmem>>, %arg3: memref<1024x10xf32, #tpu.memory_space<vmem>>, %arg4: memref<1x10xf32, #tpu.memory_space<vmem>>, %arg5: memref<8x128xf32, #tpu.memory_space<vmem>>) attributes {dimension_semantics = [#tpu.dimension_semantics<parallel>], iteration_bounds = array<i64: 2>, scalar_prefetch = 0 : i64, scratch_operands = 0 : i64, tpu.core_type = #tpu.core_type<tc>, window_params = [{transform_indices = @transform_0, window_bounds = array<i64: 16, 1024>}, {transform_indices = @transform_1, window_bounds = array<i64: 16, 1024>}, {pipeline_mode = #tpu.pipeline_mode<synchronous>, transform_indices = @transform_2, window_bounds = array<i64: 1024, 10>}, {pipeline_mode = #tpu.pipeline_mode<synchronous>, transform_indices = @transform_3, window_bounds = array<i64: 1, 10>}, {transform_indices = @transform_4, window_bounds = array<i64: 8, 128>}]} {
    %c0 = arith.constant 0 : index
    %c0_0 = arith.constant 0 : index
    %0 = vector.load %arg3[%c0, %c0_0] : memref<1024x10xf32, #tpu.memory_space<vmem>>, vector<1024x10xf32>
    %c0_1 = arith.constant 0 : index
    %c0_2 = arith.constant 0 : index
    %1 = vector.load %arg4[%c0_1, %c0_2] : memref<1x10xf32, #tpu.memory_space<vmem>>, vector<1x10xf32>
    %c0_3 = arith.constant 0 : index
    %c0_4 = arith.constant 0 : index
    %2 = vector.load %arg1[%c0_3, %c0_4] : memref<16x1024xf32, #tpu.memory_space<vmem>>, vector<16x1024xf32>
    %cst = arith.constant dense<0.000000e+00> : vector<16x10xf32>
    %3 = tpu.matmul %2, %0, %cst {dimension_numbers = #tpu.dot_dimension_numbers<[1], [0], [0], [1], [0, 0, 1, 1], [], []>} : vector<16x1024xf32>, vector<1024x10xf32>, vector<16x10xf32> -> vector<16x10xf32>
    %4 = vector.broadcast %1 : vector<1x10xf32> to vector<16x10xf32>
    %5 = arith.addf %3, %4 : vector<16x10xf32>
    %c0_5 = arith.constant 0 : index
    %c0_6 = arith.constant 0 : index
    %6 = vector.load %arg2[%c0_5, %c0_6] : memref<16x1024xf32, #tpu.memory_space<vmem>>, vector<16x1024xf32>
    %cst_7 = arith.constant dense<0.000000e+00> : vector<16x10xf32>
    %7 = tpu.matmul %6, %0, %cst_7 {dimension_numbers = #tpu.dot_dimension_numbers<[1], [0], [0], [1], [0, 0, 1, 1], [], []>} : vector<16x1024xf32>, vector<1024x10xf32>, vector<16x10xf32> -> vector<16x10xf32>
    %8 = vector.broadcast %1 : vector<1x10xf32> to vector<16x10xf32>
    %9 = arith.addf %7, %8 : vector<16x10xf32>
    %c16_i32 = arith.constant 16 : i32
    %10 = arith.muli %arg0, %c16_i32 : i32
    %11 = tpu.iota {dimensions = array<i32: 0>} : vector<16x1xi32>
    %12 = vector.broadcast %10 : i32 to vector<16x1xi32>
    %13 = arith.addi %12, %11 : vector<16x1xi32>
    %c24_i32 = arith.constant 24 : i32
    %14 = vector.broadcast %c24_i32 : i32 to vector<16x1xi32>
    %15 = arith.cmpi slt, %13, %14 : vector<16x1xi32>
    %cst_8 = arith.constant 0.000000e+00 : f32
    %16 = vector.shape_cast %15 : vector<16x1xi1> to vector<16x1xi1>
    %17 = vector.broadcast %16 : vector<16x1xi1> to vector<16x10xi1>
    %18 = vector.broadcast %cst_8 : f32 to vector<16x10xf32>
    %19 = arith.select %17, %5, %18 : vector<16x10xi1>, vector<16x10xf32>
    %cst_9 = arith.constant 0.000000e+00 : f32
    %20 = vector.shape_cast %15 : vector<16x1xi1> to vector<16x1xi1>
    %21 = vector.broadcast %20 : vector<16x1xi1> to vector<16x10xi1>
    %22 = vector.broadcast %cst_9 : f32 to vector<16x10xf32>
    %23 = arith.select %21, %9, %22 : vector<16x10xi1>, vector<16x10xf32>
    %cst_10 = arith.constant dense<0xFF800000> : vector<16xf32>
    %24 = vector.multi_reduction <maximumf>, %19, %cst_10 [1] : vector<16x10xf32> to vector<16xf32>
    %25 = vector.shape_cast %24 : vector<16xf32> to vector<16x1xf32>
    %26 = vector.broadcast %25 : vector<16x1xf32> to vector<16x10xf32>
    %27 = arith.subf %19, %26 : vector<16x10xf32>
    %28 = math.exp %27 : vector<16x10xf32>
    %cst_11 = arith.constant dense<0.000000e+00> : vector<16xf32>
    %29 = vector.multi_reduction <add>, %28, %cst_11 [1] : vector<16x10xf32> to vector<16xf32>
    %30 = vector.shape_cast %29 : vector<16xf32> to vector<16x1xf32>
    %31 = tpu.reciprocal %30 : vector<16x1xf32> -> vector<16x1xf32>
    %32 = tpu.iota {dimensions = array<i32: 1>} : vector<16x10xi32>
    %33 = vector.broadcast %25 : vector<16x1xf32> to vector<16x10xf32>
    %34 = arith.cmpf oeq, %19, %33 : vector<16x10xf32>
    %c10_i32 = arith.constant 10 : i32
    %35 = vector.broadcast %c10_i32 : i32 to vector<16x10xi32>
    %36 = arith.select %34, %32, %35 : vector<16x10xi1>, vector<16x10xi32>
    %cst_12 = arith.constant dense<2147483647> : vector<16xi32>
    %37 = vector.multi_reduction <minsi>, %36, %cst_12 [1] : vector<16x10xi32> to vector<16xi32>
    %38 = vector.shape_cast %37 : vector<16xi32> to vector<16x1xi32>
    %cst_13 = arith.constant 2.000000e-01 : f32
    %39 = vector.broadcast %cst_13 : f32 to vector<16x1xf32>
    %40 = arith.cmpf oge, %31, %39 : vector<16x1xf32>
    %41 = arith.andi %40, %15 : vector<16x1xi1>
    %42 = arith.extui %41 : vector<16x1xi1> to vector<16x1xi32>
    %43 = arith.sitofp %42 : vector<16x1xi32> to vector<16x1xf32>
    %cst_14 = arith.constant dense<0xFF800000> : vector<16xf32>
    %44 = vector.multi_reduction <maximumf>, %23, %cst_14 [1] : vector<16x10xf32> to vector<16xf32>
    %45 = vector.shape_cast %44 : vector<16xf32> to vector<16x1xf32>
    %46 = vector.broadcast %45 : vector<16x1xf32> to vector<16x10xf32>
    %47 = arith.subf %23, %46 : vector<16x10xf32>
    %48 = math.exp %47 : vector<16x10xf32>
    %cst_15 = arith.constant dense<0.000000e+00> : vector<16xf32>
    %49 = vector.multi_reduction <add>, %48, %cst_15 [1] : vector<16x10xf32> to vector<16xf32>
    %50 = vector.shape_cast %49 : vector<16xf32> to vector<16x1xf32>
    %51 = math.log %50 : vector<16x1xf32>
    %52 = arith.addf %45, %51 : vector<16x1xf32>
    %53 = vector.broadcast %38 : vector<16x1xi32> to vector<16x10xi32>
    %54 = arith.cmpi eq, %32, %53 : vector<16x10xi32>
    %55 = arith.extui %54 : vector<16x10xi1> to vector<16x10xi32>
    %56 = arith.sitofp %55 : vector<16x10xi32> to vector<16x10xf32>
    %57 = arith.mulf %23, %56 : vector<16x10xf32>
    %cst_16 = arith.constant dense<0.000000e+00> : vector<16xf32>
    %58 = vector.multi_reduction <add>, %57, %cst_16 [1] : vector<16x10xf32> to vector<16xf32>
    %59 = vector.shape_cast %58 : vector<16xf32> to vector<16x1xf32>
    %60 = arith.subf %52, %59 : vector<16x1xf32>
    %61 = arith.mulf %60, %43 : vector<16x1xf32>
    %62 = vector.shape_cast %61 : vector<16x1xf32> to vector<1x16x1xf32>
    %cst_17 = arith.constant dense<0.000000e+00> : vector<1xf32>
    %63 = vector.multi_reduction <add>, %62, %cst_17 [1, 2] : vector<1x16x1xf32> to vector<1xf32>
    %64 = vector.shape_cast %63 : vector<1xf32> to vector<1x1x1xf32>
    %65 = vector.extract %64[0, 0, 0] : f32 from vector<1x1x1xf32>
    %66 = vector.broadcast %65 : f32 to vector<8x128xf32>
    %c0_18 = arith.constant 0 : index
    %c0_19 = arith.constant 0 : index
    %67 = vector.load %arg5[%c0_18, %c0_19] : memref<8x128xf32, #tpu.memory_space<vmem>>, vector<8x128xf32>
    tpu.vector_store %arg5[%c0_18, %c0_19], %66 {strides = array<i32>} : memref<8x128xf32, #tpu.memory_space<vmem>>, vector<8x128xf32>,
    return
  }
  func.func @transform_0(%arg0: i32) -> (i32, i32) {
    %c0_i32 = arith.constant 0 : i32
    %c0_i32_0 = arith.constant 0 : i32
    return %arg0, %c0_i32 : i32, i32
  }
  func.func @transform_1(%arg0: i32) -> (i32, i32) {
    %c0_i32 = arith.constant 0 : i32
    %c0_i32_0 = arith.constant 0 : i32
    return %arg0, %c0_i32 : i32, i32
  }
  func.func @transform_2(%arg0: i32) -> (i32, i32) {
    %c0_i32 = arith.constant 0 : i32
    %c0_i32_0 = arith.constant 0 : i32
    %c0_i32_1 = arith.constant 0 : i32
    return %c0_i32, %c0_i32_0 : i32, i32
  }
  func.func @transform_3(%arg0: i32) -> (i32, i32) {
    %c0_i32 = arith.constant 0 : i32
    %c0_i32_0 = arith.constant 0 : i32
    %c0_i32_1 = arith.constant 0 : i32
    return %c0_i32, %c0_i32_0 : i32, i32
  }
  func.func @transform_4(%arg0: i32) -> (i32, i32) {
    %c0_i32 = arith.constant 0 : i32
    %c0_i32_0 = arith.constant 0 : i32
    return %arg0, %c0_i32 : i32, i32
  }
}

</mosaic_0001>

<llo_original>
// kernel: tpu_custom_call.1
$region0: #{tpu_custom_call.1}
  #allocation0 [shape = 'u32[]', space=smem, size = 0x4, offset = 0x4, fixed_abs, tag = 'smem constant byte address 0x4 - core index']
  #allocation1 [shape = 'u32[144,128]{1,0:T(1,128)}', space=vmem, size = 0x12000, scoped, tag = 'internal scratch']
  %s0 = inlined_call_operand.vmem [shape: f32[24,1024], index: 0, kind: input, shape index: {}]
  %s1 = inlined_call_operand.vmem [shape: f32[24,1024], index: 1, kind: input, shape index: {}]
  %s2 = inlined_call_operand.vmem [shape: f32[1024,10], index: 2, kind: input, shape index: {}]
  %s3 = inlined_call_operand.vmem [shape: f32[1,10], index: 3, kind: input, shape index: {}]
  %s4 = inlined_call_operand.hbm [shape: f32[16,128], index: 4, kind: output, shape index: {}]
  %s5 = sld [smem:[#allocation0]]
  $region49: #{tpu_custom_call.1} parent=0
    _
  %s7 = ssub.s32 1, %s5
  %s8 = scalar_select 0, %s7, %s5
  $region1: #{tpu_custom_call.1} parent=0
    #allocation2 [shape = 'u8[8192]{0}', space=vmem, size = 0x2000, scoped, tag = 'output window, operand 0']
    #allocation3 [shape = 's32[2]{0}', space=sflag, size = 0x8, scoped, tag = 'scoped memory for tpu_custom_call.1']
    %9 = vsyncpa [#allocation3], 0
    %s10 = scalar_lea.sflag [#allocation3], 1
    %11 = vsyncpa %s10, 0
    loop: start=0, step=1, limit=4
    $region2: #{tpu_custom_call.1} parent=1 // loop_pre_header
      _
    $region3: #{tpu_custom_call.1} parent=1 // loop_header
      %s13 = sphi 0, %s17
      %p14 = scmp.ge.s32.totalorder %s13, 4
      %s23 = sphi 0, %s25
      %s26 = sphi 0, %s23
      %s27 = sphi 0, %s26
      %s43 = sphi 0, %s27
      %s49 = sphi 0, %s51
      %s52 = sphi 0, %s49
      %s53 = sphi 0, %s52
      %s69 = sphi 0, %s53
      %s73 = sphi 0, %s73
      %s75 = sphi 0, %s73
      %s76 = sphi 0, %s75
      %s90 = sphi 0, %s76
      %s94 = sphi 0, %s94
      %s96 = sphi 0, %s94
      %s97 = sphi 0, %s96
      %s111 = sphi 0, %s97
      %s117 = sphi 0, %s119
      %s120 = sphi 0, %s117
      %s121 = sphi 0, %s120
      %s137 = sphi 0, %s121
    $region4: #{tpu_custom_call.1} parent=1 // loop_header_branch
      %16 = sbr.rel (%p14) target = $region8
    $region5: #{tpu_custom_call.1} parent=1 // loop_body
      %s18 = ssub.s32 %s13, 1
      %s19 = ssub.s32 %s13, 2
      %s20 = sadd.s32 %s13, 1
      %s21 = ssub.s32 %s13, %s20
      %p22 = scmp.eq.s32.totalorder %s21, 0
      %s24 = sadd.s32 %s23, 1
      %s25 = scalar_select %p22, %s23, %s24
      %p28 = pneg %p22
      %p29 = scmp.eq.s32.totalorder %s13, 1
      %p30 = por %p28, %p29
      %p31 = scmp.ne.s32.totalorder %s23, %s26
      %p32 = scmp.eq.s32.totalorder %s13, 0
      %p33 = por %p31, %p32
      %p34 = scmp.ne.s32.totalorder %s23, %s26
      %p35 = scmp.eq.s32.totalorder %s18, 1
      %p36 = por %p34, %p35
      %p37 = scmp.ne.s32.totalorder %s26, %s27
      %p38 = scmp.eq.s32.totalorder %s18, 0
      %p39 = por %p37, %p38
      %p40 = scmp.ne.s32.totalorder %s26, %s27
      %p41 = scmp.eq.s32.totalorder %s19, 1
      %p42 = por %p40, %p41
      %p44 = scmp.ne.s32.totalorder %s27, %s43
      %p45 = scmp.eq.s32.totalorder %s19, 0
      %p46 = por %p44, %p45
      %s47 = ssub.s32 %s13, %s20
      %p48 = scmp.eq.s32.totalorder %s47, 0
      %s50 = sadd.s32 %s49, 1
      %s51 = scalar_select %p48, %s49, %s50
      %p54 = pneg %p48
      %p55 = scmp.eq.s32.totalorder %s13, 1
      %p56 = por %p54, %p55
      %p57 = scmp.ne.s32.totalorder %s49, %s52
      %p58 = scmp.eq.s32.totalorder %s13, 0
      %p59 = por %p57, %p58
      %p60 = scmp.ne.s32.totalorder %s49, %s52
      %p61 = scmp.eq.s32.totalorder %s18, 1
      %p62 = por %p60, %p61
      %p63 = scmp.ne.s32.totalorder %s52, %s53
      %p64 = scmp.eq.s32.totalorder %s18, 0
      %p65 = por %p63, %p64
      %p66 = scmp.ne.s32.totalorder %s52, %s53
      %p67 = scmp.eq.s32.totalorder %s19, 1
      %p68 = por %p66, %p67
      %p70 = scmp.ne.s32.totalorder %s53, %s69
      %p71 = scmp.eq.s32.totalorder %s19, 0
      %p72 = por %p70, %p71
      %s74 = sadd.s32 %s73, 1
      %p77 = scmp.eq.s32.totalorder %s13, 1
      %p78 = scmp.ne.s32.totalorder %s73, %s75
      %p79 = scmp.eq.s32.totalorder %s13, 0
      %p80 = por %p78, %p79
      %p81 = scmp.ne.s32.totalorder %s73, %s75
      %p82 = scmp.eq.s32.totalorder %s18, 1
      %p83 = por %p81, %p82
      %p84 = scmp.ne.s32.totalorder %s75, %s76
      %p85 = scmp.eq.s32.totalorder %s18, 0
      %p86 = por %p84, %p85
      %p87 = scmp.ne.s32.totalorder %s75, %s76
      %p88 = scmp.eq.s32.totalorder %s19, 1
      %p89 = por %p87, %p88
      %p91 = scmp.ne.s32.totalorder %s76, %s90
      %p92 = scmp.eq.s32.totalorder %s19, 0
      %p93 = por %p91, %p92
      %s95 = sadd.s32 %s94, 1
      %p98 = scmp.eq.s32.totalorder %s13, 1
      %p99 = scmp.ne.s32.totalorder %s94, %s96
      %p100 = scmp.eq.s32.totalorder %s13, 0
      %p101 = por %p99, %p100
      %p102 = scmp.ne.s32.totalorder %s94, %s96
      %p103 = scmp.eq.s32.totalorder %s18, 1
      %p104 = por %p102, %p103
      %p105 = scmp.ne.s32.totalorder %s96, %s97
      %p106 = scmp.eq.s32.totalorder %s18, 0
      %p107 = por %p105, %p106
      %p108 = scmp.ne.s32.totalorder %s96, %s97
      %p109 = scmp.eq.s32.totalorder %s19, 1
      %p110 = por %p108, %p109
      %p112 = scmp.ne.s32.totalorder %s97, %s111
      %p113 = scmp.eq.s32.totalorder %s19, 0
      %p114 = por %p112, %p113
      %s115 = ssub.s32 %s13, %s20
      %p116 = scmp.eq.s32.totalorder %s115, 0
      %s118 = sadd.s32 %s117, 1
      %s119 = scalar_select %p116, %s117, %s118
      %p122 = pneg %p116
      %p123 = scmp.eq.s32.totalorder %s13, 1
      %p124 = por %p122, %p123
      %p125 = scmp.ne.s32.totalorder %s117, %s120
      %p126 = scmp.eq.s32.totalorder %s13, 0
      %p127 = por %p125, %p126
      %p128 = scmp.ne.s32.totalorder %s117, %s120
      %p129 = scmp.eq.s32.totalorder %s18, 1
      %p130 = por %p128, %p129
      %p131 = scmp.ne.s32.totalorder %s120, %s121
      %p132 = scmp.eq.s32.totalorder %s18, 0
      %p133 = por %p131, %p132
      %p134 = scmp.ne.s32.totalorder %s120, %s121
      %p135 = scmp.eq.s32.totalorder %s19, 1
      %p136 = por %p134, %p135
      %p138 = scmp.ne.s32.totalorder %s121, %s137
      %p139 = scmp.eq.s32.totalorder %s19, 0
      %p140 = por %p138, %p139
      %p141 = scmp.le.s32.totalorder 1, %s13
      %p142 = scmp.lt.s32.totalorder %s13, 3
      %p143 = pnand %p141, %p142
      %p144 = pneg %p143
      // Predicated region
      $region9: #{tpu_custom_call.1} parent=5 // pred_check
        _
      $region10: #{tpu_custom_call.1} parent=5 // pred_check_branch
        %146 = sbr.rel (%p143) target = $region12
      $region11: #{tpu_custom_call.1} parent=5 // pred_region
        %s147 = ssub.s32 %s13, 1
        // Predicated region
        $region13: #{tpu_custom_call.1} parent=11 // pred_check
          %p148 = pneg %p86
        $region14: #{tpu_custom_call.1} parent=11 // pred_check_branch
          %150 = sbr.rel (%p148) target = $region16
        $region15: #{tpu_custom_call.1} parent=11 // pred_region
          _
        $region16: #{tpu_custom_call.1} parent=11 // pred_fallthru
          _
        // Predicated region
        $region17: #{tpu_custom_call.1} parent=11 // pred_check
          %p151 = pneg %p107
        $region18: #{tpu_custom_call.1} parent=11 // pred_check_branch
          %153 = sbr.rel (%p151) target = $region20
        $region19: #{tpu_custom_call.1} parent=11 // pred_region
          _
        $region20: #{tpu_custom_call.1} parent=11 // pred_fallthru
          _
      $region12: #{tpu_custom_call.1} parent=5 // pred_fallthru
        _
      %p154 = scmp.lt.s32.totalorder %s13, 2
      // Predicated region
      $region21: #{tpu_custom_call.1} parent=5 // pred_check
        %p155 = pneg %p154
      $region22: #{tpu_custom_call.1} parent=5 // pred_check_branch
        %157 = sbr.rel (%p155) target = $region24
      $region23: #{tpu_custom_call.1} parent=5 // pred_region
        // Predicated region
        $region25: #{tpu_custom_call.1} parent=23 // pred_check
          %p158 = pneg %p33
        $region26: #{tpu_custom_call.1} parent=23 // pred_check_branch
          %160 = sbr.rel (%p158) target = $region28
        $region27: #{tpu_custom_call.1} parent=23 // pred_region
          %s161 = smul.u32 2, %s13
          %s162 = ssub.s32 3, %s161
          %p163 = scmp.lt.s32.totalorder %s162, 2
          %s164 = scalar_select %p163, %s162, 2
          %s165 = smul.u32 128, %s164
          %s166 = smul.u32 %s165, 8
          %p167 = scmp.lt.s32.totalorder %s161, 2
          %s168 = scalar_select %p167, %s161, 2
          %s169 = smul.addr %s168, 8
          %s170 = smul.addr %s169, 8
          %s171 = scalar_lea.vmem %s0, %s170
          %s172 = smul.u32 2, %s13
          %s173 = ssub.s32 3, %s172
          %p174 = scmp.lt.s32.totalorder %s173, 2
          %s175 = scalar_select %p174, %s173, 2
          %s176 = smul.u32 128, %s175
          %s177 = smul.u32 %s176, 8
        $region28: #{tpu_custom_call.1} parent=23 // pred_fallthru
          _
        // Predicated region
        $region29: #{tpu_custom_call.1} parent=23 // pred_check
          %p178 = pneg %p59
        $region30: #{tpu_custom_call.1} parent=23 // pred_check_branch
          %180 = sbr.rel (%p178) target = $region32
        $region31: #{tpu_custom_call.1} parent=23 // pred_region
          %s181 = smul.u32 2, %s13
          %s182 = ssub.s32 3, %s181
          %p183 = scmp.lt.s32.totalorder %s182, 2
          %s184 = scalar_select %p183, %s182, 2
          %s185 = smul.u32 128, %s184
          %s186 = smul.u32 %s185, 8
          %p187 = scmp.lt.s32.totalorder %s181, 2
          %s188 = scalar_select %p187, %s181, 2
          %s189 = smul.addr %s188, 8
          %s190 = smul.addr %s189, 8
          %s191 = scalar_lea.vmem %s1, %s190
          %s192 = smul.u32 2, %s13
          %s193 = ssub.s32 3, %s192
          %p194 = scmp.lt.s32.totalorder %s193, 2
          %s195 = scalar_select %p194, %s193, 2
          %s196 = smul.u32 128, %s195
          %s197 = smul.u32 %s196, 8
        $region32: #{tpu_custom_call.1} parent=23 // pred_fallthru
          _
      $region24: #{tpu_custom_call.1} parent=5 // pred_fallthru
        _
      %p198 = scmp.le.s32.totalorder 1, %s13
      %p199 = scmp.lt.s32.totalorder %s13, 3
      %p200 = pnand %p198, %p199
      %p201 = pneg %p200
      // Predicated region
      $region33: #{tpu_custom_call.1} parent=5 // pred_check
        _
      $region34: #{tpu_custom_call.1} parent=5 // pred_check_branch
        %203 = sbr.rel (%p200) target = $region36
      $region35: #{tpu_custom_call.1} parent=5 // pred_region
        %s204 = ssub.s32 %s13, 1
        %s205 = smul.u32 2, %s18
        %s206 = ssub.s32 3, %s205
        %p207 = scmp.lt.s32.totalorder %s206, 2
        %s208 = scalar_select %p207, %s206, 2
        %s209 = smul.u32 128, %s208
        %s210 = smul.u32 %s209, 8
        %p211 = scmp.lt.s32.totalorder %s205, 2
        %s212 = scalar_select %p211, %s205, 2
        %s213 = smul.addr %s212, 8
        %s214 = smul.addr %s213, 8
        %s215 = scalar_lea.vmem %s0, %s214
        %p216 = pneg %p39
        %p217 = pneg %p36
        %s218 = smul.u32 2, %s18
        %s219 = ssub.s32 3, %s218
        %p220 = scmp.lt.s32.totalorder %s219, 2
        %s221 = scalar_select %p220, %s219, 2
        %s222 = smul.u32 128, %s221
        %s223 = smul.u32 %s222, 8
        %p224 = scmp.lt.s32.totalorder %s218, 2
        %s225 = scalar_select %p224, %s218, 2
        %s226 = smul.addr %s225, 8
        %s227 = smul.addr %s226, 8
        %s228 = scalar_lea.vmem %s1, %s227
        %p229 = pneg %p65
        %p230 = pneg %p62
        %p231 = pneg %p86
        %p232 = pneg %p83
        %p233 = pneg %p107
        %p234 = pneg %p104
        %p235 = pneg %p133
        %p236 = pneg %p130
        %s237 = sand.u32 %s120, 1
        %s238 = scalar_lea.sflag [#allocation3], %s237
        %s239 = sand.u32 %s120, 1
        %s240 = smul.addr %s239, 8
        %s241 = scalar_lea.vmem [#allocation2], %s240
        %s242 = smul.u32 2, %s18
        %s243 = ssub.s32 3, %s242
        %p244 = scmp.lt.s32.totalorder %s243, 2
        %s245 = scalar_select %p244, %s243, 2
        %s246 = smul.u32 128, %s245
        %s247 = smul.u32 %s246, 8
        %p248 = scmp.lt.s32.totalorder %s242, 2
        %s249 = scalar_select %p248, %s242, 2
        %s250 = smul.addr %s249, 8
        %s251 = smul.addr %s250, 8
        %s252 = scalar_lea.vmem %s0, %s251
        %s253 = smul.u32 2, %s18
        %s254 = ssub.s32 3, %s253
        %p255 = scmp.lt.s32.totalorder %s254, 2
        %s256 = scalar_select %p255, %s254, 2
        %s257 = smul.u32 128, %s256
        %s258 = smul.u32 %s257, 8
        %s259 = smul.u32 2, %s18
        %s260 = ssub.s32 3, %s259
        %p261 = scmp.lt.s32.totalorder %s260, 2
        %s262 = scalar_select %p261, %s260, 2
        %s263 = smul.u32 128, %s262
        %s264 = smul.u32 %s263, 8
        %p265 = scmp.lt.s32.totalorder %s259, 2
        %s266 = scalar_select %p265, %s259, 2
        %s267 = smul.addr %s266, 8
        %s268 = smul.addr %s267, 8
        %s269 = scalar_lea.vmem %s1, %s268
        %s270 = smul.u32 2, %s18
        %s271 = ssub.s32 3, %s270
        %p272 = scmp.lt.s32.totalorder %s271, 2
        %s273 = scalar_select %p272, %s271, 2
        %s274 = smul.u32 128, %s273
        %s275 = smul.u32 %s274, 8
        %v276 = vld [vmem:[%s2] sm:$0xff]
        %v277 = vld [vmem:[%s2 + $0x8] sm:$0xff]
        %v278 = vld [vmem:[%s2 + $0x10] sm:$0xff]
        %v279 = vld [vmem:[%s2 + $0x18] sm:$0xff]
        %v280 = vld [vmem:[%s2 + $0x20] sm:$0xff]
        %v281 = vld [vmem:[%s2 + $0x28] sm:$0xff]
        %v282 = vld [vmem:[%s2 + $0x30] sm:$0xff]
        %v283 = vld [vmem:[%s2 + $0x38] sm:$0xff]
        %v284 = vld [vmem:[%s2 + $0x40] sm:$0xff]
        %v285 = vld [vmem:[%s2 + $0x48] sm:$0xff]
        %v286 = vld [vmem:[%s2 + $0x50] sm:$0xff]
        %v287 = vld [vmem:[%s2 + $0x58] sm:$0xff]
        %v288 = vld [vmem:[%s2 + $0x60] sm:$0xff]
        %v289 = vld [vmem:[%s2 + $0x68] sm:$0xff]
        %v290 = vld [vmem:[%s2 + $0x70] sm:$0xff]
        %v291 = vld [vmem:[%s2 + $0x78] sm:$0xff]
        %v292 = vld [vmem:[%s2 + $0x80] sm:$0xff]
        %v293 = vld [vmem:[%s2 + $0x88] sm:$0xff]
        %v294 = vld [vmem:[%s2 + $0x90] sm:$0xff]
        %v295 = vld [vmem:[%s2 + $0x98] sm:$0xff]
        %v296 = vld [vmem:[%s2 + $0xa0] sm:$0xff]
        %v297 = vld [vmem:[%s2 + $0xa8] sm:$0xff]
        %v298 = vld [vmem:[%s2 + $0xb0] sm:$0xff]
        %v299 = vld [vmem:[%s2 + $0xb8] sm:$0xff]
        %v300 = vld [vmem:[%s2 + $0xc0] sm:$0xff]
        %v301 = vld [vmem:[%s2 + $0xc8] sm:$0xff]
        %v302 = vld [vmem:[%s2 + $0xd0] sm:$0xff]
        %v303 = vld [vmem:[%s2 + $0xd8] sm:$0xff]
        %v304 = vld [vmem:[%s2 + $0xe0] sm:$0xff]
        %v305 = vld [vmem:[%s2 + $0xe8] sm:$0xff]
        %v306 = vld [vmem:[%s2 + $0xf0] sm:$0xff]
        %v307 = vld [vmem:[%s2 + $0xf8] sm:$0xff]
        %v308 = vld [vmem:[%s2 + $0x100] sm:$0xff]
        %v309 = vld [vmem:[%s2 + $0x108] sm:$0xff]
        %v310 = vld [vmem:[%s2 + $0x110] sm:$0xff]
        %v311 = vld [vmem:[%s2 + $0x118] sm:$0xff]
        %v312 = vld [vmem:[%s2 + $0x120] sm:$0xff]
        %v313 = vld [vmem:[%s2 + $0x128] sm:$0xff]
        %v314 = vld [vmem:[%s2 + $0x130] sm:$0xff]
        %v315 = vld [vmem:[%s2 + $0x138] sm:$0xff]
        %v316 = vld [vmem:[%s2 + $0x140] sm:$0xff]
        %v317 = vld [vmem:[%s2 + $0x148] sm:$0xff]
        %v318 = vld [vmem:[%s2 + $0x150] sm:$0xff]
        %v319 = vld [vmem:[%s2 + $0x158] sm:$0xff]
        %v320 = vld [vmem:[%s2 + $0x160] sm:$0xff]
        %v321 = vld [vmem:[%s2 + $0x168] sm:$0xff]
        %v322 = vld [vmem:[%s2 + $0x170] sm:$0xff]
        %v323 = vld [vmem:[%s2 + $0x178] sm:$0xff]
        %v324 = vld [vmem:[%s2 + $0x180] sm:$0xff]
        %v325 = vld [vmem:[%s2 + $0x188] sm:$0xff]
        %v326 = vld [vmem:[%s2 + $0x190] sm:$0xff]
        %v327 = vld [vmem:[%s2 + $0x198] sm:$0xff]
        %v328 = vld [vmem:[%s2 + $0x1a0] sm:$0xff]
        %v329 = vld [vmem:[%s2 + $0x1a8] sm:$0xff]
        %v330 = vld [vmem:[%s2 + $0x1b0] sm:$0xff]
        %v331 = vld [vmem:[%s2 + $0x1b8] sm:$0xff]
        %v332 = vld [vmem:[%s2 + $0x1c0] sm:$0xff]
        %v333 = vld [vmem:[%s2 + $0x1c8] sm:$0xff]
        %v334 = vld [vmem:[%s2 + $0x1d0] sm:$0xff]
        %v335 = vld [vmem:[%s2 + $0x1d8] sm:$0xff]
        %v336 = vld [vmem:[%s2 + $0x1e0] sm:$0xff]
        %v337 = vld [vmem:[%s2 + $0x1e8] sm:$0xff]
        %v338 = vld [vmem:[%s2 + $0x1f0] sm:$0xff]
        %v339 = vld [vmem:[%s2 + $0x1f8] sm:$0xff]
        %v340 = vld [vmem:[%s2 + $0x200] sm:$0xff]
        %v341 = vld [vmem:[%s2 + $0x208] sm:$0xff]
        %v342 = vld [vmem:[%s2 + $0x210] sm:$0xff]
        %v343 = vld [vmem:[%s2 + $0x218] sm:$0xff]
        %v344 = vld [vmem:[%s2 + $0x220] sm:$0xff]
        %v345 = vld [vmem:[%s2 + $0x228] sm:$0xff]
        %v346 = vld [vmem:[%s2 + $0x230] sm:$0xff]
        %v347 = vld [vmem:[%s2 + $0x238] sm:$0xff]
        %v348 = vld [vmem:[%s2 + $0x240] sm:$0xff]
        %v349 = vld [vmem:[%s2 + $0x248] sm:$0xff]
        %v350 = vld [vmem:[%s2 + $0x250] sm:$0xff]
        %v351 = vld [vmem:[%s2 + $0x258] sm:$0xff]
        %v352 = vld [vmem:[%s2 + $0x260] sm:$0xff]
        %v353 = vld [vmem:[%s2 + $0x268] sm:$0xff]
        %v354 = vld [vmem:[%s2 + $0x270] sm:$0xff]
        %v355 = vld [vmem:[%s2 + $0x278] sm:$0xff]
        %v356 = vld [vmem:[%s2 + $0x280] sm:$0xff]
        %v357 = vld [vmem:[%s2 + $0x288] sm:$0xff]
        %v358 = vld [vmem:[%s2 + $0x290] sm:$0xff]
        %v359 = vld [vmem:[%s2 + $0x298] sm:$0xff]
        %v360 = vld [vmem:[%s2 + $0x2a0] sm:$0xff]
        %v361 = vld [vmem:[%s2 + $0x2a8] sm:$0xff]
        %v362 = vld [vmem:[%s2 + $0x2b0] sm:$0xff]
        %v363 = vld [vmem:[%s2 + $0x2b8] sm:$0xff]
        %v364 = vld [vmem:[%s2 + $0x2c0] sm:$0xff]
        %v365 = vld [vmem:[%s2 + $0x2c8] sm:$0xff]
        %v366 = vld [vmem:[%s2 + $0x2d0] sm:$0xff]
        %v367 = vld [vmem:[%s2 + $0x2d8] sm:$0xff]
        %v368 = vld [vmem:[%s2 + $0x2e0] sm:$0xff]
        %v369 = vld [vmem:[%s2 + $0x2e8] sm:$0xff]
        %v370 = vld [vmem:[%s2 + $0x2f0] sm:$0xff]
        %v371 = vld [vmem:[%s2 + $0x2f8] sm:$0xff]
        %v372 = vld [vmem:[%s2 + $0x300] sm:$0xff]
        %v373 = vld [vmem:[%s2 + $0x308] sm:$0xff]
        %v374 = vld [vmem:[%s2 + $0x310] sm:$0xff]
        %v375 = vld [vmem:[%s2 + $0x318] sm:$0xff]
        %v376 = vld [vmem:[%s2 + $0x320] sm:$0xff]
        %v377 = vld [vmem:[%s2 + $0x328] sm:$0xff]
        %v378 = vld [vmem:[%s2 + $0x330] sm:$0xff]
        %v379 = vld [vmem:[%s2 + $0x338] sm:$0xff]
        %v380 = vld [vmem:[%s2 + $0x340] sm:$0xff]
        %v381 = vld [vmem:[%s2 + $0x348] sm:$0xff]
        %v382 = vld [vmem:[%s2 + $0x350] sm:$0xff]
        %v383 = vld [vmem:[%s2 + $0x358] sm:$0xff]
        %v384 = vld [vmem:[%s2 + $0x360] sm:$0xff]
        %v385 = vld [vmem:[%s2 + $0x368] sm:$0xff]
        %v386 = vld [vmem:[%s2 + $0x370] sm:$0xff]
        %v387 = vld [vmem:[%s2 + $0x378] sm:$0xff]
        %v388 = vld [vmem:[%s2 + $0x380] sm:$0xff]
        %v389 = vld [vmem:[%s2 + $0x388] sm:$0xff]
        %v390 = vld [vmem:[%s2 + $0x390] sm:$0xff]
        %v391 = vld [vmem:[%s2 + $0x398] sm:$0xff]
        %v392 = vld [vmem:[%s2 + $0x3a0] sm:$0xff]
        %v393 = vld [vmem:[%s2 + $0x3a8] sm:$0xff]
        %v394 = vld [vmem:[%s2 + $0x3b0] sm:$0xff]
        %v395 = vld [vmem:[%s2 + $0x3b8] sm:$0xff]
        %v396 = vld [vmem:[%s2 + $0x3c0] sm:$0xff]
        %v397 = vld [vmem:[%s2 + $0x3c8] sm:$0xff]
        %v398 = vld [vmem:[%s2 + $0x3d0] sm:$0xff]
        %v399 = vld [vmem:[%s2 + $0x3d8] sm:$0xff]
        %v400 = vld [vmem:[%s2 + $0x3e0] sm:$0xff]
        %v401 = vld [vmem:[%s2 + $0x3e8] sm:$0xff]
        %v402 = vld [vmem:[%s2 + $0x3f0] sm:$0xff]
        %v403 = vld [vmem:[%s2 + $0x3f8] sm:$0xff]
        %v404 = vld [vmem:[%s3] sm:$0x1]
        %v405 = vld [vmem:[%s252] sm:$0xff]
        %v406 = vld [vmem:[%s252 + $0x8] sm:$0xff]
        %v407 = vld [vmem:[%s252 + $0x10] sm:$0xff]
        %v408 = vld [vmem:[%s252 + $0x18] sm:$0xff]
        %v409 = vld [vmem:[%s252 + $0x20] sm:$0xff]
        %v410 = vld [vmem:[%s252 + $0x28] sm:$0xff]
        %v411 = vld [vmem:[%s252 + $0x30] sm:$0xff]
        %v412 = vld [vmem:[%s252 + $0x38] sm:$0xff]
        %v413 = vld [vmem:[%s252 + $0x40] sm:$0xff]
        %v414 = vld [vmem:[%s252 + $0x48] sm:$0xff]
        %v415 = vld [vmem:[%s252 + $0x50] sm:$0xff]
        %v416 = vld [vmem:[%s252 + $0x58] sm:$0xff]
        %v417 = vld [vmem:[%s252 + $0x60] sm:$0xff]
        %v418 = vld [vmem:[%s252 + $0x68] sm:$0xff]
        %v419 = vld [vmem:[%s252 + $0x70] sm:$0xff]
        %v420 = vld [vmem:[%s252 + $0x78] sm:$0xff]
        %v422 = vlaneseq
        %v423 = vshrl.u32 %v422, 7
        %v424 = vsub.s32 0, %v423
        %v425 = vrot.slane %v404, %v424
        %427 = vmatprep.subr.mxu0 0.0
        %428 = vmatpush1.msra.mxu0 %v276
        %429 = vmatprep.subr.mxu0 0.0
        %430 = vmatpush1.msra.mxu0 %v277
        %431 = vmatprep.subr.mxu0 0.0
        %432 = vmatpush1.msra.mxu0 %v278
        %433 = vmatprep.subr.mxu0 0.0
        %434 = vmatpush1.msra.mxu0 %v279
        %435 = vmatprep.subr.mxu0 0.0
        %436 = vmatpush1.msra.mxu0 %v280
        %437 = vmatprep.subr.mxu0 0.0
        %438 = vmatpush1.msra.mxu0 %v281
        %439 = vmatprep.subr.mxu0 0.0
        %440 = vmatpush1.msra.mxu0 %v282
        %441 = vmatprep.subr.mxu0 0.0
        %442 = vmatpush1.msra.mxu0 %v283
        %443 = vmatprep.subr.mxu0 0.0
        %444 = vmatpush1.msra.mxu0 %v284
        %445 = vmatprep.subr.mxu0 0.0
        %446 = vmatpush1.msra.mxu0 %v285
        %447 = vmatprep.subr.mxu0 0.0
        %448 = vmatpush1.msra.mxu0 %v286
        %449 = vmatprep.subr.mxu0 0.0
        %450 = vmatpush1.msra.mxu0 %v287
        %451 = vmatprep.subr.mxu0 0.0
        %452 = vmatpush1.msra.mxu0 %v288
        %453 = vmatprep.subr.mxu0 0.0
        %454 = vmatpush1.msra.mxu0 %v289
        %455 = vmatprep.subr.mxu0 0.0
        %456 = vmatpush1.msra.mxu0 %v290
        %457 = vmatprep.subr.mxu0 0.0
        %458 = vmatpush1.msra.mxu0 %v291
        %459 = vmatprep.subr.mxu0 0.0
        %460 = vmatpush1.msra.mxu0 %v292
        %461 = vmatprep.subr.mxu0 0.0
        %462 = vmatpush1.msra.mxu0 %v293
        %463 = vmatprep.subr.mxu0 0.0
        %464 = vmatpush1.msra.mxu0 %v294
        %465 = vmatprep.subr.mxu0 0.0
        %466 = vmatpush1.msra.mxu0 %v295
        %467 = vmatprep.subr.mxu0 0.0
        %468 = vmatpush1.msra.mxu0 %v296
        %469 = vmatprep.subr.mxu0 0.0
        %470 = vmatpush1.msra.mxu0 %v297
        %471 = vmatprep.subr.mxu0 0.0
        %472 = vmatpush1.msra.mxu0 %v298
        %473 = vmatprep.subr.mxu0 0.0
        %474 = vmatpush1.msra.mxu0 %v299
        %475 = vmatprep.subr.mxu0 0.0
        %476 = vmatpush1.msra.mxu0 %v300
        %477 = vmatprep.subr.mxu0 0.0
        %478 = vmatpush1.msra.mxu0 %v301
        %479 = vmatprep.subr.mxu0 0.0
        %480 = vmatpush1.msra.mxu0 %v302
        %481 = vmatprep.subr.mxu0 0.0
        %482 = vmatpush1.msra.mxu0 %v303
        %483 = vmatprep.subr.mxu0 0.0
        %484 = vmatpush1.msra.mxu0 %v304
        %485 = vmatprep.subr.mxu0 0.0
        %486 = vmatpush1.msra.mxu0 %v305
        %487 = vmatprep.subr.mxu0 0.0
        %488 = vmatpush1.msra.mxu0 %v306
        %489 = vmatprep.subr.mxu0 0.0
        %490 = vmatpush1.msra.mxu0 %v307
        %491 = vmatprep.mubr.f32.mxu0 %v406
        %492 = vmatmul.mubr.f32.gmra.mrb[0].mxu0 %v405
        %v493 = vpop.f32.mrb[0].mxu0
        %v494 = vadd.f32 %v425, %v493
        %v495 = vpop.f32.mrb[0].mxu0
        %496 = vmatprep.mubr.f32.mxu0 %v414
        %497 = vmatmul.mubr.f32.gmra.mrb[0].mxu0 %v413
        %v498 = vpop.f32.mrb[0].mxu0
        %v499 = vadd.f32 %v425, %v498
        %v500 = vpop.f32.mrb[0].mxu0
        %501 = vdwg.mxu0
        %502 = vmatprep.subr.mxu0 0.0
        %503 = vmatpush1.msra.mxu0 %v308
        %504 = vmatprep.subr.mxu0 0.0
        %505 = vmatpush1.msra.mxu0 %v309
        %506 = vmatprep.subr.mxu0 0.0
        %507 = vmatpush1.msra.mxu0 %v310
        %508 = vmatprep.subr.mxu0 0.0
        %509 = vmatpush1.msra.mxu0 %v311
        %510 = vmatprep.subr.mxu0 0.0
        %511 = vmatpush1.msra.mxu0 %v312
        %512 = vmatprep.subr.mxu0 0.0
        %513 = vmatpush1.msra.mxu0 %v313
        %514 = vmatprep.subr.mxu0 0.0
        %515 = vmatpush1.msra.mxu0 %v314
        %516 = vmatprep.subr.mxu0 0.0
        %517 = vmatpush1.msra.mxu0 %v315
        %518 = vmatprep.subr.mxu0 0.0
        %519 = vmatpush1.msra.mxu0 %v316
        %520 = vmatprep.subr.mxu0 0.0
        %521 = vmatpush1.msra.mxu0 %v317
        %522 = vmatprep.subr.mxu0 0.0
        %523 = vmatpush1.msra.mxu0 %v318
        %524 = vmatprep.subr.mxu0 0.0
        %525 = vmatpush1.msra.mxu0 %v319
        %526 = vmatprep.subr.mxu0 0.0
        %527 = vmatpush1.msra.mxu0 %v320
        %528 = vmatprep.subr.mxu0 0.0
        %529 = vmatpush1.msra.mxu0 %v321
        %530 = vmatprep.subr.mxu0 0.0
        %531 = vmatpush1.msra.mxu0 %v322
        %532 = vmatprep.subr.mxu0 0.0
        %533 = vmatpush1.msra.mxu0 %v323
        %534 = vmatprep.subr.mxu0 0.0
        %535 = vmatpush1.msra.mxu0 %v324
        %536 = vmatprep.subr.mxu0 0.0
        %537 = vmatpush1.msra.mxu0 %v325
        %538 = vmatprep.subr.mxu0 0.0
        %539 = vmatpush1.msra.mxu0 %v326
        %540 = vmatprep.subr.mxu0 0.0
        %541 = vmatpush1.msra.mxu0 %v327
        %542 = vmatprep.subr.mxu0 0.0
        %543 = vmatpush1.msra.mxu0 %v328
        %544 = vmatprep.subr.mxu0 0.0
        %545 = vmatpush1.msra.mxu0 %v329
        %546 = vmatprep.subr.mxu0 0.0
        %547 = vmatpush1.msra.mxu0 %v330
        %548 = vmatprep.subr.mxu0 0.0
        %549 = vmatpush1.msra.mxu0 %v331
        %550 = vmatprep.subr.mxu0 0.0
        %551 = vmatpush1.msra.mxu0 %v332
        %552 = vmatprep.subr.mxu0 0.0
        %553 = vmatpush1.msra.mxu0 %v333
        %554 = vmatprep.subr.mxu0 0.0
        %555 = vmatpush1.msra.mxu0 %v334
        %556 = vmatprep.subr.mxu0 0.0
        %557 = vmatpush1.msra.mxu0 %v335
        %558 = vmatprep.subr.mxu0 0.0
        %559 = vmatpush1.msra.mxu0 %v336
        %560 = vmatprep.subr.mxu0 0.0
        %561 = vmatpush1.msra.mxu0 %v337
        %562 = vmatprep.subr.mxu0 0.0
        %563 = vmatpush1.msra.mxu0 %v338
        %564 = vmatprep.subr.mxu0 0.0
        %565 = vmatpush1.msra.mxu0 %v339
        %566 = vmatprep.mubr.f32.mxu0 %v408
        %567 = vmatmul.mubr.f32.gmra.mrb[0].mxu0 %v407
        %v568 = vpop.f32.mrb[0].mxu0
        %v569 = vadd.f32 %v494, %v568
        %v570 = vpop.f32.mrb[0].mxu0
        %571 = vmatprep.mubr.f32.mxu0 %v416
        %572 = vmatmul.mubr.f32.gmra.mrb[0].mxu0 %v415
        %v573 = vpop.f32.mrb[0].mxu0
        %v574 = vadd.f32 %v499, %v573
        %v575 = vpop.f32.mrb[0].mxu0
        %576 = vdwg.mxu0
        %577 = vmatprep.subr.mxu0 0.0
        %578 = vmatpush1.msra.mxu0 %v340
        %579 = vmatprep.subr.mxu0 0.0
        %580 = vmatpush1.msra.mxu0 %v341
        %581 = vmatprep.subr.mxu0 0.0
        %582 = vmatpush1.msra.mxu0 %v342
        %583 = vmatprep.subr.mxu0 0.0
        %584 = vmatpush1.msra.mxu0 %v343
        %585 = vmatprep.subr.mxu0 0.0
        %586 = vmatpush1.msra.mxu0 %v344
        %587 = vmatprep.subr.mxu0 0.0
        %588 = vmatpush1.msra.mxu0 %v345
        %589 = vmatprep.subr.mxu0 0.0
        %590 = vmatpush1.msra.mxu0 %v346
        %591 = vmatprep.subr.mxu0 0.0
        %592 = vmatpush1.msra.mxu0 %v347
        %593 = vmatprep.subr.mxu0 0.0
        %594 = vmatpush1.msra.mxu0 %v348
        %595 = vmatprep.subr.mxu0 0.0
        %596 = vmatpush1.msra.mxu0 %v349
        %597 = vmatprep.subr.mxu0 0.0
        %598 = vmatpush1.msra.mxu0 %v350
        %599 = vmatprep.subr.mxu0 0.0
        %600 = vmatpush1.msra.mxu0 %v351
        %601 = vmatprep.subr.mxu0 0.0
        %602 = vmatpush1.msra.mxu0 %v352
        %603 = vmatprep.subr.mxu0 0.0
        %604 = vmatpush1.msra.mxu0 %v353
        %605 = vmatprep.subr.mxu0 0.0
        %606 = vmatpush1.msra.mxu0 %v354
        %607 = vmatprep.subr.mxu0 0.0
        %608 = vmatpush1.msra.mxu0 %v355
        %609 = vmatprep.subr.mxu0 0.0
        %610 = vmatpush1.msra.mxu0 %v356
        %611 = vmatprep.subr.mxu0 0.0
        %612 = vmatpush1.msra.mxu0 %v357
        %613 = vmatprep.subr.mxu0 0.0
        %614 = vmatpush1.msra.mxu0 %v358
        %615 = vmatprep.subr.mxu0 0.0
        %616 = vmatpush1.msra.mxu0 %v359
        %617 = vmatprep.subr.mxu0 0.0
        %618 = vmatpush1.msra.mxu0 %v360
        %619 = vmatprep.subr.mxu0 0.0
        %620 = vmatpush1.msra.mxu0 %v361
        %621 = vmatprep.subr.mxu0 0.0
        %622 = vmatpush1.msra.mxu0 %v362
        %623 = vmatprep.subr.mxu0 0.0
        %624 = vmatpush1.msra.mxu0 %v363
        %625 = vmatprep.subr.mxu0 0.0
        %626 = vmatpush1.msra.mxu0 %v364
        %627 = vmatprep.subr.mxu0 0.0
        %628 = vmatpush1.msra.mxu0 %v365
        %629 = vmatprep.subr.mxu0 0.0
        %630 = vmatpush1.msra.mxu0 %v366
        %631 = vmatprep.subr.mxu0 0.0
        %632 = vmatpush1.msra.mxu0 %v367
        %633 = vmatprep.subr.mxu0 0.0
        %634 = vmatpush1.msra.mxu0 %v368
        %635 = vmatprep.subr.mxu0 0.0
        %636 = vmatpush1.msra.mxu0 %v369
        %637 = vmatprep.subr.mxu0 0.0
        %638 = vmatpush1.msra.mxu0 %v370
        %639 = vmatprep.subr.mxu0 0.0
        %640 = vmatpush1.msra.mxu0 %v371
        %641 = vmatprep.mubr.f32.mxu0 %v410
        %642 = vmatmul.mubr.f32.gmra.mrb[0].mxu0 %v409
        %v643 = vpop.f32.mrb[0].mxu0
        %v644 = vadd.f32 %v569, %v643
        %v645 = vpop.f32.mrb[0].mxu0
        %646 = vmatprep.mubr.f32.mxu0 %v418
        %647 = vmatmul.mubr.f32.gmra.mrb[0].mxu0 %v417
        %v648 = vpop.f32.mrb[0].mxu0
        %v649 = vadd.f32 %v574, %v648
        %v650 = vpop.f32.mrb[0].mxu0
        %651 = vdwg.mxu0
        %652 = vmatprep.subr.mxu0 0.0
        %653 = vmatpush1.msra.mxu0 %v372
        %654 = vmatprep.subr.mxu0 0.0
        %655 = vmatpush1.msra.mxu0 %v373
        %656 = vmatprep.subr.mxu0 0.0
        %657 = vmatpush1.msra.mxu0 %v374
        %658 = vmatprep.subr.mxu0 0.0
        %659 = vmatpush1.msra.mxu0 %v375
        %660 = vmatprep.subr.mxu0 0.0
        %661 = vmatpush1.msra.mxu0 %v376
        %662 = vmatprep.subr.mxu0 0.0
        %663 = vmatpush1.msra.mxu0 %v377
        %664 = vmatprep.subr.mxu0 0.0
        %665 = vmatpush1.msra.mxu0 %v378
        %666 = vmatprep.subr.mxu0 0.0
        %667 = vmatpush1.msra.mxu0 %v379
        %668 = vmatprep.subr.mxu0 0.0
        %669 = vmatpush1.msra.mxu0 %v380
        %670 = vmatprep.subr.mxu0 0.0
        %671 = vmatpush1.msra.mxu0 %v381
        %672 = vmatprep.subr.mxu0 0.0
        %673 = vmatpush1.msra.mxu0 %v382
        %674 = vmatprep.subr.mxu0 0.0
        %675 = vmatpush1.msra.mxu0 %v383
        %676 = vmatprep.subr.mxu0 0.0
        %677 = vmatpush1.msra.mxu0 %v384
        %678 = vmatprep.subr.mxu0 0.0
        %679 = vmatpush1.msra.mxu0 %v385
        %680 = vmatprep.subr.mxu0 0.0
        %681 = vmatpush1.msra.mxu0 %v386
        %682 = vmatprep.subr.mxu0 0.0
        %683 = vmatpush1.msra.mxu0 %v387
        %684 = vmatprep.subr.mxu0 0.0
        %685 = vmatpush1.msra.mxu0 %v388
        %686 = vmatprep.subr.mxu0 0.0
        %687 = vmatpush1.msra.mxu0 %v389
        %688 = vmatprep.subr.mxu0 0.0
        %689 = vmatpush1.msra.mxu0 %v390
        %690 = vmatprep.subr.mxu0 0.0
        %691 = vmatpush1.msra.mxu0 %v391
        %692 = vmatprep.subr.mxu0 0.0
        %693 = vmatpush1.msra.mxu0 %v392
        %694 = vmatprep.subr.mxu0 0.0
        %695 = vmatpush1.msra.mxu0 %v393
        %696 = vmatprep.subr.mxu0 0.0
        %697 = vmatpush1.msra.mxu0 %v394
        %698 = vmatprep.subr.mxu0 0.0
        %699 = vmatpush1.msra.mxu0 %v395
        %700 = vmatprep.subr.mxu0 0.0
        %701 = vmatpush1.msra.mxu0 %v396
        %702 = vmatprep.subr.mxu0 0.0
        %703 = vmatpush1.msra.mxu0 %v397
        %704 = vmatprep.subr.mxu0 0.0
        %705 = vmatpush1.msra.mxu0 %v398
        %706 = vmatprep.subr.mxu0 0.0
        %707 = vmatpush1.msra.mxu0 %v399
        %708 = vmatprep.subr.mxu0 0.0
        %709 = vmatpush1.msra.mxu0 %v400
        %710 = vmatprep.subr.mxu0 0.0
        %711 = vmatpush1.msra.mxu0 %v401
        %712 = vmatprep.subr.mxu0 0.0
        %713 = vmatpush1.msra.mxu0 %v402
        %714 = vmatprep.subr.mxu0 0.0
        %715 = vmatpush1.msra.mxu0 %v403
        %716 = vmatprep.mubr.f32.mxu0 %v412
        %717 = vmatmul.mubr.f32.gmra.mrb[0].mxu0 %v411
        %v718 = vpop.f32.mrb[0].mxu0
        %v719 = vadd.f32 %v644, %v718
        %v720 = vpop.f32.mrb[0].mxu0
        %721 = vmatprep.mubr.f32.mxu0 %v420
        %722 = vmatmul.mubr.f32.gmra.mrb[0].mxu0 %v419
        %v723 = vpop.f32.mrb[0].mxu0
        %v724 = vadd.f32 %v649, %v723
        %v725 = vpop.f32.mrb[0].mxu0
        %726 = vdwg.mxu0
        %v727 = vld [vmem:[%s269] sm:$0xff]
        %v728 = vld [vmem:[%s269 + $0x8] sm:$0xff]
        %v729 = vld [vmem:[%s269 + $0x10] sm:$0xff]
        %v730 = vld [vmem:[%s269 + $0x18] sm:$0xff]
        %v731 = vld [vmem:[%s269 + $0x20] sm:$0xff]
        %v732 = vld [vmem:[%s269 + $0x28] sm:$0xff]
        %v733 = vld [vmem:[%s269 + $0x30] sm:$0xff]
        %v734 = vld [vmem:[%s269 + $0x38] sm:$0xff]
        %v735 = vld [vmem:[%s269 + $0x40] sm:$0xff]
        %v736 = vld [vmem:[%s269 + $0x48] sm:$0xff]
        %v737 = vld [vmem:[%s269 + $0x50] sm:$0xff]
        %v738 = vld [vmem:[%s269 + $0x58] sm:$0xff]
        %v739 = vld [vmem:[%s269 + $0x60] sm:$0xff]
        %v740 = vld [vmem:[%s269 + $0x68] sm:$0xff]
        %v741 = vld [vmem:[%s269 + $0x70] sm:$0xff]
        %v742 = vld [vmem:[%s269 + $0x78] sm:$0xff]
        %743 = vmatprep.subr.mxu0 0.0
        %744 = vmatpush1.msra.mxu0 %v276
        %745 = vmatprep.subr.mxu0 0.0
        %746 = vmatpush1.msra.mxu0 %v277
        %747 = vmatprep.subr.mxu0 0.0
        %748 = vmatpush1.msra.mxu0 %v278
        %749 = vmatprep.subr.mxu0 0.0
        %750 = vmatpush1.msra.mxu0 %v279
        %751 = vmatprep.subr.mxu0 0.0
        %752 = vmatpush1.msra.mxu0 %v280
        %753 = vmatprep.subr.mxu0 0.0
        %754 = vmatpush1.msra.mxu0 %v281
        %755 = vmatprep.subr.mxu0 0.0
        %756 = vmatpush1.msra.mxu0 %v282
        %757 = vmatprep.subr.mxu0 0.0
        %758 = vmatpush1.msra.mxu0 %v283
        %759 = vmatprep.subr.mxu0 0.0
        %760 = vmatpush1.msra.mxu0 %v284
        %761 = vmatprep.subr.mxu0 0.0
        %762 = vmatpush1.msra.mxu0 %v285
        %763 = vmatprep.subr.mxu0 0.0
        %764 = vmatpush1.msra.mxu0 %v286
        %765 = vmatprep.subr.mxu0 0.0
        %766 = vmatpush1.msra.mxu0 %v287
        %767 = vmatprep.subr.mxu0 0.0
        %768 = vmatpush1.msra.mxu0 %v288
        %769 = vmatprep.subr.mxu0 0.0
        %770 = vmatpush1.msra.mxu0 %v289
        %771 = vmatprep.subr.mxu0 0.0
        %772 = vmatpush1.msra.mxu0 %v290
        %773 = vmatprep.subr.mxu0 0.0
        %774 = vmatpush1.msra.mxu0 %v291
        %775 = vmatprep.subr.mxu0 0.0
        %776 = vmatpush1.msra.mxu0 %v292
        %777 = vmatprep.subr.mxu0 0.0
        %778 = vmatpush1.msra.mxu0 %v293
        %779 = vmatprep.subr.mxu0 0.0
        %780 = vmatpush1.msra.mxu0 %v294
        %781 = vmatprep.subr.mxu0 0.0
        %782 = vmatpush1.msra.mxu0 %v295
        %783 = vmatprep.subr.mxu0 0.0
        %784 = vmatpush1.msra.mxu0 %v296
        %785 = vmatprep.subr.mxu0 0.0
        %786 = vmatpush1.msra.mxu0 %v297
        %787 = vmatprep.subr.mxu0 0.0
        %788 = vmatpush1.msra.mxu0 %v298
        %789 = vmatprep.subr.mxu0 0.0
        %790 = vmatpush1.msra.mxu0 %v299
        %791 = vmatprep.subr.mxu0 0.0
        %792 = vmatpush1.msra.mxu0 %v300
        %793 = vmatprep.subr.mxu0 0.0
        %794 = vmatpush1.msra.mxu0 %v301
        %795 = vmatprep.subr.mxu0 0.0
        %796 = vmatpush1.msra.mxu0 %v302
        %797 = vmatprep.subr.mxu0 0.0
        %798 = vmatpush1.msra.mxu0 %v303
        %799 = vmatprep.subr.mxu0 0.0
        %800 = vmatpush1.msra.mxu0 %v304
        %801 = vmatprep.subr.mxu0 0.0
        %802 = vmatpush1.msra.mxu0 %v305
        %803 = vmatprep.subr.mxu0 0.0
        %804 = vmatpush1.msra.mxu0 %v306
        %805 = vmatprep.subr.mxu0 0.0
        %806 = vmatpush1.msra.mxu0 %v307
        %807 = vmatprep.mubr.f32.mxu0 %v728
        %808 = vmatmul.mubr.f32.gmra.mrb[0].mxu0 %v727
        %v809 = vpop.f32.mrb[0].mxu0
        %v810 = vadd.f32 %v425, %v809
        %v811 = vpop.f32.mrb[0].mxu0
        %812 = vmatprep.mubr.f32.mxu0 %v736
        %813 = vmatmul.mubr.f32.gmra.mrb[0].mxu0 %v735
        %v814 = vpop.f32.mrb[0].mxu0
        %v815 = vadd.f32 %v425, %v814
        %v816 = vpop.f32.mrb[0].mxu0
        %817 = vdwg.mxu0
        %818 = vmatprep.subr.mxu0 0.0
        %819 = vmatpush1.msra.mxu0 %v308
        %820 = vmatprep.subr.mxu0 0.0
        %821 = vmatpush1.msra.mxu0 %v309
        %822 = vmatprep.subr.mxu0 0.0
        %823 = vmatpush1.msra.mxu0 %v310
        %824 = vmatprep.subr.mxu0 0.0
        %825 = vmatpush1.msra.mxu0 %v311
        %826 = vmatprep.subr.mxu0 0.0
        %827 = vmatpush1.msra.mxu0 %v312
        %828 = vmatprep.subr.mxu0 0.0
        %829 = vmatpush1.msra.mxu0 %v313
        %830 = vmatprep.subr.mxu0 0.0
        %831 = vmatpush1.msra.mxu0 %v314
        %832 = vmatprep.subr.mxu0 0.0
        %833 = vmatpush1.msra.mxu0 %v315
        %834 = vmatprep.subr.mxu0 0.0
        %835 = vmatpush1.msra.mxu0 %v316
        %836 = vmatprep.subr.mxu0 0.0
        %837 = vmatpush1.msra.mxu0 %v317
        %838 = vmatprep.subr.mxu0 0.0
        %839 = vmatpush1.msra.mxu0 %v318
        %840 = vmatprep.subr.mxu0 0.0
        %841 = vmatpush1.msra.mxu0 %v319
        %842 = vmatprep.subr.mxu0 0.0
        %843 = vmatpush1.msra.mxu0 %v320
        %844 = vmatprep.subr.mxu0 0.0
        %845 = vmatpush1.msra.mxu0 %v321
        %846 = vmatprep.subr.mxu0 0.0
        %847 = vmatpush1.msra.mxu0 %v322
        %848 = vmatprep.subr.mxu0 0.0
        %849 = vmatpush1.msra.mxu0 %v323
        %850 = vmatprep.subr.mxu0 0.0
        %851 = vmatpush1.msra.mxu0 %v324
        %852 = vmatprep.subr.mxu0 0.0
        %853 = vmatpush1.msra.mxu0 %v325
        %854 = vmatprep.subr.mxu0 0.0
        %855 = vmatpush1.msra.mxu0 %v326
        %856 = vmatprep.subr.mxu0 0.0
        %857 = vmatpush1.msra.mxu0 %v327
        %858 = vmatprep.subr.mxu0 0.0
        %859 = vmatpush1.msra.mxu0 %v328
        %860 = vmatprep.subr.mxu0 0.0
        %861 = vmatpush1.msra.mxu0 %v329
        %862 = vmatprep.subr.mxu0 0.0
        %863 = vmatpush1.msra.mxu0 %v330
        %864 = vmatprep.subr.mxu0 0.0
        %865 = vmatpush1.msra.mxu0 %v331
        %866 = vmatprep.subr.mxu0 0.0
        %867 = vmatpush1.msra.mxu0 %v332
        %868 = vmatprep.subr.mxu0 0.0
        %869 = vmatpush1.msra.mxu0 %v333
        %870 = vmatprep.subr.mxu0 0.0
        %871 = vmatpush1.msra.mxu0 %v334
        %872 = vmatprep.subr.mxu0 0.0
        %873 = vmatpush1.msra.mxu0 %v335
        %874 = vmatprep.subr.mxu0 0.0
        %875 = vmatpush1.msra.mxu0 %v336
        %876 = vmatprep.subr.mxu0 0.0
        %877 = vmatpush1.msra.mxu0 %v337
        %878 = vmatprep.subr.mxu0 0.0
        %879 = vmatpush1.msra.mxu0 %v338
        %880 = vmatprep.subr.mxu0 0.0
        %881 = vmatpush1.msra.mxu0 %v339
        %882 = vmatprep.mubr.f32.mxu0 %v730
        %883 = vmatmul.mubr.f32.gmra.mrb[0].mxu0 %v729
        %v884 = vpop.f32.mrb[0].mxu0
        %v885 = vadd.f32 %v810, %v884
        %v886 = vpop.f32.mrb[0].mxu0
        %887 = vmatprep.mubr.f32.mxu0 %v738
        %888 = vmatmul.mubr.f32.gmra.mrb[0].mxu0 %v737
        %v889 = vpop.f32.mrb[0].mxu0
        %v890 = vadd.f32 %v815, %v889
        %v891 = vpop.f32.mrb[0].mxu0
        %892 = vdwg.mxu0
        %893 = vmatprep.subr.mxu0 0.0
        %894 = vmatpush1.msra.mxu0 %v340
        %895 = vmatprep.subr.mxu0 0.0
        %896 = vmatpush1.msra.mxu0 %v341
        %897 = vmatprep.subr.mxu0 0.0
        %898 = vmatpush1.msra.mxu0 %v342
        %899 = vmatprep.subr.mxu0 0.0
        %900 = vmatpush1.msra.mxu0 %v343
        %901 = vmatprep.subr.mxu0 0.0
        %902 = vmatpush1.msra.mxu0 %v344
        %903 = vmatprep.subr.mxu0 0.0
        %904 = vmatpush1.msra.mxu0 %v345
        %905 = vmatprep.subr.mxu0 0.0
        %906 = vmatpush1.msra.mxu0 %v346
        %907 = vmatprep.subr.mxu0 0.0
        %908 = vmatpush1.msra.mxu0 %v347
        %909 = vmatprep.subr.mxu0 0.0
        %910 = vmatpush1.msra.mxu0 %v348
        %911 = vmatprep.subr.mxu0 0.0
        %912 = vmatpush1.msra.mxu0 %v349
        %913 = vmatprep.subr.mxu0 0.0
        %914 = vmatpush1.msra.mxu0 %v350
        %915 = vmatprep.subr.mxu0 0.0
        %916 = vmatpush1.msra.mxu0 %v351
        %917 = vmatprep.subr.mxu0 0.0
        %918 = vmatpush1.msra.mxu0 %v352
        %919 = vmatprep.subr.mxu0 0.0
        %920 = vmatpush1.msra.mxu0 %v353
        %921 = vmatprep.subr.mxu0 0.0
        %922 = vmatpush1.msra.mxu0 %v354
        %923 = vmatprep.subr.mxu0 0.0
        %924 = vmatpush1.msra.mxu0 %v355
        %925 = vmatprep.subr.mxu0 0.0
        %926 = vmatpush1.msra.mxu0 %v356
        %927 = vmatprep.subr.mxu0 0.0
        %928 = vmatpush1.msra.mxu0 %v357
        %929 = vmatprep.subr.mxu0 0.0
        %930 = vmatpush1.msra.mxu0 %v358
        %931 = vmatprep.subr.mxu0 0.0
        %932 = vmatpush1.msra.mxu0 %v359
        %933 = vmatprep.subr.mxu0 0.0
        %934 = vmatpush1.msra.mxu0 %v360
        %935 = vmatprep.subr.mxu0 0.0
        %936 = vmatpush1.msra.mxu0 %v361
        %937 = vmatprep.subr.mxu0 0.0
        %938 = vmatpush1.msra.mxu0 %v362
        %939 = vmatprep.subr.mxu0 0.0
        %940 = vmatpush1.msra.mxu0 %v363
        %941 = vmatprep.subr.mxu0 0.0
        %942 = vmatpush1.msra.mxu0 %v364
        %943 = vmatprep.subr.mxu0 0.0
        %944 = vmatpush1.msra.mxu0 %v365
        %945 = vmatprep.subr.mxu0 0.0
        %946 = vmatpush1.msra.mxu0 %v366
        %947 = vmatprep.subr.mxu0 0.0
        %948 = vmatpush1.msra.mxu0 %v367
        %949 = vmatprep.subr.mxu0 0.0
        %950 = vmatpush1.msra.mxu0 %v368
        %951 = vmatprep.subr.mxu0 0.0
        %952 = vmatpush1.msra.mxu0 %v369
        %953 = vmatprep.subr.mxu0 0.0
        %954 = vmatpush1.msra.mxu0 %v370
        %955 = vmatprep.subr.mxu0 0.0
        %956 = vmatpush1.msra.mxu0 %v371
        %957 = vmatprep.mubr.f32.mxu0 %v732
        %958 = vmatmul.mubr.f32.gmra.mrb[0].mxu0 %v731
        %v959 = vpop.f32.mrb[0].mxu0
        %v960 = vadd.f32 %v885, %v959
        %v961 = vpop.f32.mrb[0].mxu0
        %962 = vmatprep.mubr.f32.mxu0 %v740
        %963 = vmatmul.mubr.f32.gmra.mrb[0].mxu0 %v739
        %v964 = vpop.f32.mrb[0].mxu0
        %v965 = vadd.f32 %v890, %v964
        %v966 = vpop.f32.mrb[0].mxu0
        %967 = vdwg.mxu0
        %968 = vmatprep.subr.mxu0 0.0
        %969 = vmatpush1.msra.mxu0 %v372
        %970 = vmatprep.subr.mxu0 0.0
        %971 = vmatpush1.msra.mxu0 %v373
        %972 = vmatprep.subr.mxu0 0.0
        %973 = vmatpush1.msra.mxu0 %v374
        %974 = vmatprep.subr.mxu0 0.0
        %975 = vmatpush1.msra.mxu0 %v375
        %976 = vmatprep.subr.mxu0 0.0
        %977 = vmatpush1.msra.mxu0 %v376
        %978 = vmatprep.subr.mxu0 0.0
        %979 = vmatpush1.msra.mxu0 %v377
        %980 = vmatprep.subr.mxu0 0.0
        %981 = vmatpush1.msra.mxu0 %v378
        %982 = vmatprep.subr.mxu0 0.0
        %983 = vmatpush1.msra.mxu0 %v379
        %984 = vmatprep.subr.mxu0 0.0
        %985 = vmatpush1.msra.mxu0 %v380
        %986 = vmatprep.subr.mxu0 0.0
        %987 = vmatpush1.msra.mxu0 %v381
        %988 = vmatprep.subr.mxu0 0.0
        %989 = vmatpush1.msra.mxu0 %v382
        %990 = vmatprep.subr.mxu0 0.0
        %991 = vmatpush1.msra.mxu0 %v383
        %992 = vmatprep.subr.mxu0 0.0
        %993 = vmatpush1.msra.mxu0 %v384
        %994 = vmatprep.subr.mxu0 0.0
        %995 = vmatpush1.msra.mxu0 %v385
        %996 = vmatprep.subr.mxu0 0.0
        %997 = vmatpush1.msra.mxu0 %v386
        %998 = vmatprep.subr.mxu0 0.0
        %999 = vmatpush1.msra.mxu0 %v387
        %1000 = vmatprep.subr.mxu0 0.0
        %1001 = vmatpush1.msra.mxu0 %v388
        %1002 = vmatprep.subr.mxu0 0.0
        %1003 = vmatpush1.msra.mxu0 %v389
        %1004 = vmatprep.subr.mxu0 0.0
        %1005 = vmatpush1.msra.mxu0 %v390
        %1006 = vmatprep.subr.mxu0 0.0
        %1007 = vmatpush1.msra.mxu0 %v391
        %1008 = vmatprep.subr.mxu0 0.0
        %1009 = vmatpush1.msra.mxu0 %v392
        %1010 = vmatprep.subr.mxu0 0.0
        %1011 = vmatpush1.msra.mxu0 %v393
        %1012 = vmatprep.subr.mxu0 0.0
        %1013 = vmatpush1.msra.mxu0 %v394
        %1014 = vmatprep.subr.mxu0 0.0
        %1015 = vmatpush1.msra.mxu0 %v395
        %1016 = vmatprep.subr.mxu0 0.0
        %1017 = vmatpush1.msra.mxu0 %v396
        %1018 = vmatprep.subr.mxu0 0.0
        %1019 = vmatpush1.msra.mxu0 %v397
        %1020 = vmatprep.subr.mxu0 0.0
        %1021 = vmatpush1.msra.mxu0 %v398
        %1022 = vmatprep.subr.mxu0 0.0
        %1023 = vmatpush1.msra.mxu0 %v399
        %1024 = vmatprep.subr.mxu0 0.0
        %1025 = vmatpush1.msra.mxu0 %v400
        %1026 = vmatprep.subr.mxu0 0.0
        %1027 = vmatpush1.msra.mxu0 %v401
        %1028 = vmatprep.subr.mxu0 0.0
        %1029 = vmatpush1.msra.mxu0 %v402
        %1030 = vmatprep.subr.mxu0 0.0
        %1031 = vmatpush1.msra.mxu0 %v403
        %1032 = vmatprep.mubr.f32.mxu0 %v734
        %1033 = vmatmul.mubr.f32.gmra.mrb[0].mxu0 %v733
        %v1034 = vpop.f32.mrb[0].mxu0
        %v1035 = vadd.f32 %v960, %v1034
        %v1036 = vpop.f32.mrb[0].mxu0
        %1037 = vmatprep.mubr.f32.mxu0 %v742
        %1038 = vmatmul.mubr.f32.gmra.mrb[0].mxu0 %v741
        %v1039 = vpop.f32.mrb[0].mxu0
        %v1040 = vadd.f32 %v965, %v1039
        %v1041 = vpop.f32.mrb[0].mxu0
        %1042 = vdwg.mxu0
        %s1043 = smul.u32 %s18, 16
        %v1044 = vlaneseq
        %v1045 = vshrl.u32 %v1044, 7
        %v1046 = vadd.s32 %v1045, 8
        %v1047 = vstv %s1043
        %v1048 = vadd.s32 %v1047, %v1045
        %v1049 = vadd.s32 %v1047, %v1046
        %vm1050 = vcmp.lt.s32.totalorder %v1048, 24
        %vm1051 = vcmp.lt.s32.totalorder %v1049, 24
        %v1052 = vsel %vm1050, 1, 0
        %v1053 = vsel %vm1051, 1, 0
        %vm1054 = vcmp.eq.s32.totalorder %v1052, 1
        %vm1055 = vcmp.eq.s32.totalorder %v1053, 1
        %v1056 = vsel %vm1054, %v719, 0.0
        %v1057 = vsel %vm1055, %v724, 0.0
        %v1058 = vsel %vm1054, %v1035, 0.0
        %v1059 = vsel %vm1055, %v1040, 0.0
        %vm1060 = vcmask 80896
        %v1061 = vsel %vm1060, %v1056, -inf
        %1062 = vmax.xlane.f32.xlu0 %v1061
        %v1063 = vpop.xlane.xlu0 %1062
        %v1064 = vsel %vm1060, %v1057, -inf
        %1065 = vmax.xlane.f32.xlu0 %v1064
        %v1066 = vpop.xlane.xlu0 %1065
        %v1067 = vsub.f32 %v1056, %v1063
        %v1068 = vsub.f32 %v1057, %v1066
        %v1069 = vmul.f32 %v1067, 1.442695
        %v1070 = vpow.pop %v1069
        %v1071 = vmul.f32 %v1068, 1.442695
        %v1072 = vpow.pop %v1071
        %v1073 = vsel %vm1060, %v1070, 0.0
        %1074 = vadd.xlane.f32.xlu0 %v1073
        %v1075 = vpop.xlane.xlu0 %1074
        %v1076 = vsel %vm1060, %v1072, 0.0
        %1077 = vadd.xlane.f32.xlu0 %v1076
        %v1078 = vpop.xlane.xlu0 %1077
        %v1079 = vrcp.pop %v1075
        %v1080 = vrcp.pop %v1078
        %v1081 = vlaneseq
        %v1082 = vand.u32 %v1081, 127
        %vm1083 = vcmp.eq.f32.partialorder %v1056, %v1063
        %vm1084 = vcmp.eq.f32.partialorder %v1057, %v1066
        %v1085 = vsel %vm1083, %v1082, 10
        %v1086 = vsel %vm1084, %v1082, 10
        %v1087 = vsel %vm1060, %v1085, 2147483647
        %v1088 = vand.u32 %v1087, 65535
        %v1089 = vshra.s32 %v1087, 16
        %v1090 = vcvt.s32.f32 %v1088
        %v1091 = vcvt.s32.f32 %v1089
        %1092 = vmin.xlane.f32.xlu0 %v1091
        %v1093 = vpop.xlane.xlu0 %1092
        %vm1094 = vcmp.eq.f32.partialorder %v1091, %v1093
        %v1095 = vsel %vm1094, %v1090, inf
        %1096 = vmin.xlane.f32.xlu0 %v1095
        %v1097 = vpop.xlane.xlu0 %1096
        %v1098 = vcvt.f32.s32 %v1097
        %v1099 = vcvt.f32.s32 %v1093
        %v1100 = vshll.u32 %v1099, 16
        %v1101 = vadd.s32 %v1100, %v1098
        %v1102 = vsel %vm1060, %v1086, 2147483647
        %v1103 = vand.u32 %v1102, 65535
        %v1104 = vshra.s32 %v1102, 16
        %v1105 = vcvt.s32.f32 %v1103
        %v1106 = vcvt.s32.f32 %v1104
        %1107 = vmin.xlane.f32.xlu0 %v1106
        %v1108 = vpop.xlane.xlu0 %1107
        %vm1109 = vcmp.eq.f32.partialorder %v1106, %v1108
        %v1110 = vsel %vm1109, %v1105, inf
        %1111 = vmin.xlane.f32.xlu0 %v1110
        %v1112 = vpop.xlane.xlu0 %1111
        %v1113 = vcvt.f32.s32 %v1112
        %v1114 = vcvt.f32.s32 %v1108
        %v1115 = vshll.u32 %v1114, 16
        %v1116 = vadd.s32 %v1115, %v1113
        %vm1117 = vcmp.ge.f32.partialorder %v1079, 0.2
        %vm1118 = vcmp.ge.f32.partialorder %v1080, 0.2
        %vm1119 = vmand %vm1117, %vm1050
        %vm1120 = vmand %vm1118, %vm1051
        %v1121 = vsel %vm1119, 1, 0
        %v1122 = vsel %vm1120, 1, 0
        %v1123 = vcvt.s32.f32 %v1121
        %v1124 = vcvt.s32.f32 %v1122
        %v1125 = vsel %vm1060, %v1058, -inf
        %1126 = vmax.xlane.f32.xlu0 %v1125
        %v1127 = vpop.xlane.xlu0 %1126
        %v1128 = vsel %vm1060, %v1059, -inf
        %1129 = vmax.xlane.f32.xlu0 %v1128
        %v1130 = vpop.xlane.xlu0 %1129
        %v1131 = vsub.f32 %v1058, %v1127
        %v1132 = vsub.f32 %v1059, %v1130
        %v1133 = vmul.f32 %v1131, 1.442695
        %v1134 = vpow.pop %v1133
        %v1135 = vmul.f32 %v1132, 1.442695
        %v1136 = vpow.pop %v1135
        %v1137 = vsel %vm1060, %v1134, 0.0
        %1138 = vadd.xlane.f32.xlu0 %v1137
        %v1139 = vpop.xlane.xlu0 %1138
        %v1140 = vsel %vm1060, %v1136, 0.0
        %1141 = vadd.xlane.f32.xlu0 %v1140
        %v1142 = vpop.xlane.xlu0 %1141
        %v1143 = vlog2.pop %v1139
        %v1144 = vmul.f32 %v1143, 0.6931472
        %v1145 = vlog2.pop %v1142
        %v1146 = vmul.f32 %v1145, 0.6931472
        %v1147 = vadd.f32 %v1127, %v1144
        %v1148 = vadd.f32 %v1130, %v1146
        %vm1149 = vcmp.eq.s32.totalorder %v1082, %v1101
        %vm1150 = vcmp.eq.s32.totalorder %v1082, %v1116
        %v1151 = vsel %vm1149, 1, 0
        %v1152 = vsel %vm1150, 1, 0
        %v1153 = vcvt.s32.f32 %v1151
        %v1154 = vcvt.s32.f32 %v1152
        %v1155 = vmul.f32 %v1058, %v1153
        %v1156 = vmul.f32 %v1059, %v1154
        %v1157 = vsel %vm1060, %v1155, 0.0
        %1158 = vadd.xlane.f32.xlu0 %v1157
        %v1159 = vpop.xlane.xlu0 %1158
        %v1160 = vsel %vm1060, %v1156, 0.0
        %1161 = vadd.xlane.f32.xlu0 %v1160
        %v1162 = vpop.xlane.xlu0 %1161
        %v1163 = vsub.f32 %v1147, %v1159
        %v1164 = vsub.f32 %v1148, %v1162
        %v1165 = vmul.f32 %v1163, %v1123
        %v1166 = vmul.f32 %v1164, %v1124
        %vm1167 = vcmask 7168
        %v1168 = vsel %vm1167, %v1165, 0.0
        %v1169 = vsel %vm1167, %v1166, 0.0
        %v1170 = vadd.f32 %v1168, %v1169
        %1171 = vadd.xlane.f32.xlu0 %v1170
        %v1172 = vpop.xlane.xlu0 %1171
        %v1173 = vrot.slane %v1172, 4
        %v1174 = vadd.f32 %v1172, %v1173
        %v1175 = vrot.slane %v1174, 2
        %v1176 = vadd.f32 %v1174, %v1175
        %v1177 = vrot.slane %v1176, 1
        %v1178 = vadd.f32 %v1176, %v1177
        %s1179 = vtos %v1178
        %v1180 = vstv %s1179
        %1181 = vst [vmem:[%s241] sm:$0xff] %v1180
        %s1182 = sand.u32 %s120, 1
        %s1183 = scalar_lea.sflag [#allocation3], %s1182
        %s1184 = sand.u32 %s120, 1
        %s1185 = smul.addr %s1184, 8
        %s1186 = scalar_lea.vmem [#allocation2], %s1185
        // Predicated region
        $region37: #{tpu_custom_call.1} parent=35 // pred_check
          %p1187 = pneg %p130
        $region38: #{tpu_custom_call.1} parent=35 // pred_check_branch
          %1189 = sbr.rel (%p1187) target = $region40
        $region39: #{tpu_custom_call.1} parent=35 // pred_region
          %s1191 = ssub.s32 128, 128
          %1192 = vsyncadd %s1183, %s1191
          %s1193 = smul.addr %s18, 128
          %s1194 = scalar_lea.hbm %s4, %s1193
          %s1196 = sshll.u32 %s1186, 4
          %s1197 = int_to_ptr.vmem [resolvable:$true] %s1196
          %1199 = dma.vmem_to_hbm [thread:$0]  %s1197, 128, %s1194, %s1183
        $region40: #{tpu_custom_call.1} parent=35 // pred_fallthru
          _
      $region36: #{tpu_custom_call.1} parent=5 // pred_fallthru
        _
      %p1200 = scmp.le.s32.totalorder 2, %s13
      // Predicated region
      $region41: #{tpu_custom_call.1} parent=5 // pred_check
        %p1201 = pneg %p1200
      $region42: #{tpu_custom_call.1} parent=5 // pred_check_branch
        %1203 = sbr.rel (%p1201) target = $region44
      $region43: #{tpu_custom_call.1} parent=5 // pred_region
        %s1204 = ssub.s32 %s13, 2
        // Predicated region
        $region45: #{tpu_custom_call.1} parent=43 // pred_check
          %p1205 = pneg %p136
        $region46: #{tpu_custom_call.1} parent=43 // pred_check_branch
          %1207 = sbr.rel (%p1205) target = $region48
        $region47: #{tpu_custom_call.1} parent=43 // pred_region
          %s1208 = sand.u32 %s121, 1
          %s1209 = scalar_lea.sflag [#allocation3], %s1208
          %s1210 = sand.u32 %s121, 1
          %s1211 = smul.addr %s1210, 8
          %s1212 = scalar_lea.vmem [#allocation2], %s1211
          %1213 = dma.done %s1209, 128
        $region48: #{tpu_custom_call.1} parent=43 // pred_fallthru
          _
      $region44: #{tpu_custom_call.1} parent=5 // pred_fallthru
        _
    $region6: #{tpu_custom_call.1} parent=1 // loop_footer
      %s17 = sadd.s32 1, %s13
    $region7: #{tpu_custom_call.1} parent=1 // loop_footer_branch
      %12 = sbr.rel target = $region3
    $region8: #{tpu_custom_call.1} parent=1 // loop_exit
      _
    %1214 = vsyncpa [#allocation3], 1
    %s1215 = scalar_lea.sflag [#allocation3], 1
    %1216 = vsyncpa %s1215, 1

</llo_original>
